<compile_context>
chip_gen: v5e
topology: v5e:2x2
jax: 0.10.0
libtpu: 0.0.40
codegen_flags: <defaults>
</compile_context>

<pallas_src>
import jax
import jax.numpy as jnp
from jax.experimental import pallas as pl
from jax.experimental.pallas import tpu as pltpu


def adain_kernel(gb_ref, x_ref, o_ref):
    # gb_ref: [2, R, 1] float32 -- gamma (index 0) / beta (index 1) columns
    # x_ref / o_ref: [R, T]     -- spatial tile, H*W on the lane axis
    g = gb_ref[0]                                      # [R, 1]
    b = gb_ref[1]                                      # [R, 1]
    o_ref[...] = (x_ref[...] * g + b).astype(o_ref.dtype)   # streaming FMA


def _round_up(a, b):
    return (a + b - 1) // b * b


def _largest_aligned_divisor(n, align, cap):
    """Largest multiple of `align` that divides `n` and is <= cap (0 if none)."""
    limit = min(n, cap)
    for m in range(limit // align, 0, -1):
        t = m * align
        if n % t == 0:
            return t
    return 0


def _vmem_capacity_bytes():
    """Physical per-core VMEM; conservative 64 MiB (v7x) if the query fails."""
    try:
        info = pltpu.get_tpu_info()
        cap = getattr(info, "vmem_capacity_bytes", None)
        if cap:
            return int(cap)
    except Exception:
        pass
    return 64 * 1024 * 1024


def _choose_tiles(n_rows, n_lanes, itemsize, target_block_bytes):
    """Pick (R, T): T a multiple of 128 dividing n_lanes, R a multiple of 8
    (or the full row extent) dividing n_rows, with R*T*itemsize ~ target."""
    # Lane tile first (assuming the minimal 8-row sublane tile).
    t_cap = max(128, target_block_bytes // (8 * itemsize))
    T = _largest_aligned_divisor(n_lanes, 128, min(n_lanes, t_cap))
    if T == 0:                       # n_lanes < 128 (caller pads when needed)
        T = n_lanes
    # Row tile to fill the byte budget.
    r_cap = max(8, target_block_bytes // (T * itemsize))
    R = _largest_aligned_divisor(n_rows, 8, min(n_rows, r_cap))
    if R == 0:                       # n_rows < 8 or unaligned full extent
        R = n_rows
    # Keep enough grid steps for megacore sharding (v7x: 2 TCs) + pipelining;
    # shrink rows, not lanes, if the grid collapses.
    def n_steps(r):
        return (n_rows // r) * (n_lanes // T)
    while n_steps(R) < 4 and R > 8:
        smaller = _largest_aligned_divisor(n_rows, 8, R - 8)
        if smaller in (0, R):
            break
        R = smaller
    return R, T


def adaptive_instance_norm(x, embedding, w_gamma, b_gamma, w_beta, b_beta,
                           row_tile=None, hw_tile=None):
    """x: [N, C, H, W] (NCHW, like PyTorch); embedding: [N, E].

    w_gamma / w_beta: [C, E] (PyTorch Linear weight layout, out x in)
    b_gamma / b_beta: [C]
    Returns: [N, C, H, W] = gamma(embedding) * x + beta(embedding)
    """
    N, C, H, W = x.shape
    NC, HW = N * C, H * W
    itemsize = jnp.dtype(x.dtype).itemsize

    # --- gamma/beta: one fused XLA matmul, packed into one tiny operand -----
    w_gb = jnp.concatenate([w_gamma, w_beta], axis=0)             # [2C, E]
    b_gb = jnp.concatenate([b_gamma, b_beta], axis=0)             # [2C]
    gb = jnp.dot(embedding, w_gb.T,
                 preferred_element_type=jnp.float32) + b_gb       # [N, 2C]
    gb = jnp.stack([gb[:, :C], gb[:, C:]], axis=0)                # [2, N, C]
    gb = gb.reshape(2, NC, 1).astype(jnp.float32)                 # [2, NC, 1]

    # --- flatten x (free reshape) and pad to lane/sublane-dense shape -------
    x2 = x.reshape(NC, HW)
    HW_p = HW if HW % 128 == 0 else _round_up(HW, 128)
    NC_p = NC if (NC % 8 == 0 or NC < 8) else _round_up(NC, 8)
    padded = (HW_p != HW) or (NC_p != NC)
    if padded:
        x2 = jnp.pad(x2, ((0, NC_p - NC), (0, HW_p - HW)))
        if NC_p != NC:
            gb = jnp.pad(gb, ((0, 0), (0, NC_p - NC), (0, 0)))

    # --- byte-budgeted, generation-aware tile selection ----------------------
    vmem_cap = _vmem_capacity_bytes()
    # 4 x-sized buffers are live at once (double-buffered in + out): target
    # ~vmem_cap/8 per block, clamped to [0.5 MiB, 12 MiB].
    target_block = max(512 * 1024, min(12 * 1024 * 1024, vmem_cap // 8))
    R, T = _choose_tiles(NC_p, HW_p, itemsize, target_block)
    if row_tile is not None:
        R = row_tile
    if hw_tile is not None:
        T = hw_tile
    assert NC_p % R == 0 and (R % 8 == 0 or R == NC_p), "bad row_tile"
    assert HW_p % T == 0 and (T % 128 == 0 or T == HW_p), "bad hw_tile"

    block_bytes = R * T * itemsize
    vmem_limit = int(min(vmem_cap - (8 << 20),
                         max(4 * block_bytes + (8 << 20), 32 << 20)))

    grid = (NC_p // R, HW_p // T)
    out2 = pl.pallas_call(
        adain_kernel,
        out_shape=jax.ShapeDtypeStruct((NC_p, HW_p), x.dtype),
        grid=grid,
        in_specs=[
            pl.BlockSpec((2, R, 1), lambda i, j: (0, i, 0)),   # gamma/beta cols
            pl.BlockSpec((R, T), lambda i, j: (i, j)),         # x tile
        ],
        out_specs=pl.BlockSpec((R, T), lambda i, j: (i, j)),
        compiler_params=pltpu.CompilerParams(
            dimension_semantics=("parallel", "parallel"),
            vmem_limit_bytes=vmem_limit),
    )(gb, x2)

    if padded:
        out2 = out2[:NC, :HW]
    return out2.reshape(N, C, H, W)


def _reference(x, embedding, w_gamma, b_gamma, w_beta, b_beta):
    gamma = embedding @ w_gamma.T + b_gamma           # [N, C]
    beta = embedding @ w_beta.T + b_beta              # [N, C]
    return gamma[:, :, None, None] * x + beta[:, :, None, None]


if __name__ == "__main__":
    key = jax.random.PRNGKey(0)

    def make_case(k, N, C, H, W, E):
        kx, ke, kwg, kbg, kwb, kbb = jax.random.split(k, 6)
        x = jax.random.normal(kx, (N, C, H, W), dtype=jnp.float32)
        emb = jax.random.normal(ke, (N, E), dtype=jnp.float32)
        bound = 1.0 / (E ** 0.5)   # PyTorch Linear init range (deterministic)
        wg = jax.random.uniform(kwg, (C, E), jnp.float32, -bound, bound)
        bg = jax.random.uniform(kbg, (C,), jnp.float32, -bound, bound)
        wb = jax.random.uniform(kwb, (C, E), jnp.float32, -bound, bound)
        bb = jax.random.uniform(kbb, (C,), jnp.float32, -bound, bound)
        return (x, emb, wg, bg, wb, bb)

    k1, k2, k3 = jax.random.split(key, 3)

    # Case 1: aligned shapes, auto (byte-budgeted) tiling.
    args = make_case(k1, 2, 8, 16, 16, 64)
    out = jax.block_until_ready(adaptive_instance_norm(*args))
    ref = _reference(*args)
    assert out.shape == args[0].shape
    assert jnp.allclose(out, ref, atol=1e-5, rtol=1e-5), "case 1 mismatch"

    # Case 2: forced small tiles -> multi-step grid over rows AND lanes.
    args = make_case(k2, 2, 8, 16, 16, 64)
    out = jax.block_until_ready(
        adaptive_instance_norm(*args, row_tile=8, hw_tile=128))
    ref = _reference(*args)
    assert jnp.allclose(out, ref, atol=1e-5, rtol=1e-5), "case 2 mismatch"

    # Case 3: H*W not a multiple of 128 and N*C not a multiple of 8
    # (exercises the pad-and-slice path instead of a full-plane block).
    args = make_case(k3, 2, 3, 10, 10, 64)
    out = jax.block_until_ready(adaptive_instance_norm(*args))
    ref = _reference(*args)
    assert out.shape == args[0].shape
    assert jnp.allclose(out, ref, atol=1e-5, rtol=1e-5), "case 3 mismatch"

    print("KERNEL_OK")
</pallas_src>

<mosaic_0001>
module attributes {stable_mosaic.version = 11 : i64} {
  func.func @adain_kernel(%arg0: i32, %arg1: i32, %arg2: memref<2x8x1xf32, #tpu.memory_space<vmem>>, %arg3: memref<8x256xf32, #tpu.memory_space<vmem>>, %arg4: memref<8x256xf32, #tpu.memory_space<vmem>>) attributes {dimension_semantics = [#tpu.dimension_semantics<parallel>, #tpu.dimension_semantics<parallel>], iteration_bounds = array<i64: 2, 1>, scalar_prefetch = 0 : i64, scratch_operands = 0 : i64, tpu.core_type = #tpu.core_type<tc>, window_params = [{transform_indices = @transform_0, window_bounds = array<i64: 2, 8, 1>}, {transform_indices = @transform_1, window_bounds = array<i64: 8, 256>}, {transform_indices = @transform_2, window_bounds = array<i64: 8, 256>}]} {
    %c0 = arith.constant 0 : index
    %c0_0 = arith.constant 0 : index
    %c0_1 = arith.constant 0 : index
    %0 = vector.load %arg2[%c0, %c0_0, %c0_1] : memref<2x8x1xf32, #tpu.memory_space<vmem>>, vector<1x8x1xf32>
    %1 = vector.shape_cast %0 : vector<1x8x1xf32> to vector<8x1xf32>
    %c1 = arith.constant 1 : index
    %c0_2 = arith.constant 0 : index
    %c0_3 = arith.constant 0 : index
    %2 = vector.load %arg2[%c1, %c0_2, %c0_3] : memref<2x8x1xf32, #tpu.memory_space<vmem>>, vector<1x8x1xf32>
    %3 = vector.shape_cast %2 : vector<1x8x1xf32> to vector<8x1xf32>
    %c0_4 = arith.constant 0 : index
    %c0_5 = arith.constant 0 : index
    %4 = vector.load %arg3[%c0_4, %c0_5] : memref<8x256xf32, #tpu.memory_space<vmem>>, vector<8x256xf32>
    %5 = vector.broadcast %1 : vector<8x1xf32> to vector<8x256xf32>
    %6 = arith.mulf %4, %5 : vector<8x256xf32>
    %7 = vector.broadcast %3 : vector<8x1xf32> to vector<8x256xf32>
    %8 = arith.addf %6, %7 : vector<8x256xf32>
    %c0_6 = arith.constant 0 : index
    %c0_7 = arith.constant 0 : index
    %9 = vector.load %arg4[%c0_6, %c0_7] : memref<8x256xf32, #tpu.memory_space<vmem>>, vector<8x256xf32>
    tpu.vector_store %arg4[%c0_6, %c0_7], %8 {strides = array<i32>} : memref<8x256xf32, #tpu.memory_space<vmem>>, vector<8x256xf32>,
    return
  }
  func.func @transform_0(%arg0: i32, %arg1: i32) -> (i32, i32, i32) {
    %c0_i32 = arith.constant 0 : i32
    %c0_i32_0 = arith.constant 0 : i32
    %c0_i32_1 = arith.constant 0 : i32
    return %c0_i32, %arg0, %c0_i32_0 : i32, i32, i32
  }
  func.func @transform_1(%arg0: i32, %arg1: i32) -> (i32, i32) {
    %c0_i32 = arith.constant 0 : i32
    return %arg0, %arg1 : i32, i32
  }
  func.func @transform_2(%arg0: i32, %arg1: i32) -> (i32, i32) {
    %c0_i32 = arith.constant 0 : i32
    return %arg0, %arg1 : i32, i32
  }
}

</mosaic_0001>

<llo_original>
// kernel: tpu_custom_call.1
$region0: #{tpu_custom_call.1}
  #allocation0 [shape = 'u32[]', space=smem, size = 0x4, offset = 0x4, fixed_abs, tag = 'smem constant byte address 0x4 - core index']
  #allocation1 [shape = 'u32[72,128]{1,0:T(1,128)}', space=vmem, size = 0x9000, scoped, tag = 'internal scratch']
  %s0 = inlined_call_operand.vmem [shape: f32[2,16,1], index: 0, kind: input, shape index: {}]
  %s1 = inlined_call_operand.vmem [shape: f32[16,256], index: 1, kind: input, shape index: {}]
  %s2 = inlined_call_operand.hbm [shape: f32[16,256], index: 2, kind: output, shape index: {}]
  %s3 = sld [smem:[#allocation0]]
  $region79: #{tpu_custom_call.1} parent=0
    _
  %s5 = ssub.s32 1, %s3
  %s6 = scalar_select 0, %s5, %s3
  $region1: #{tpu_custom_call.1} parent=0
    #allocation2 [shape = 'u8[16384]{0}', space=vmem, size = 0x4000, scoped, tag = 'input window, operand 0']
    #allocation3 [shape = 'u8[16384]{0}', space=vmem, size = 0x4000, scoped, tag = 'output window, operand 0']
    #allocation4 [shape = 's32[2]{0}', space=sflag, size = 0x8, scoped, tag = 'scoped memory for tpu_custom_call.1']
    %7 = vsyncpa [#allocation4], 0
    %s8 = scalar_lea.sflag [#allocation4], 1
    %9 = vsyncpa %s8, 0
    loop: start=0, step=1, limit=4
    $region2: #{tpu_custom_call.1} parent=1 // loop_pre_header
      _
    $region3: #{tpu_custom_call.1} parent=1 // loop_header
      %s11 = sphi 0, %s15
      %p12 = scmp.ge.s32.totalorder %s11, 4
      %s18 = sphi 0, %s30
      %s19 = sphi 0, %s26
      %s20 = sphi 0, %s18
      %s21 = sphi 0, %s19
      %s22 = sphi 0, %s20
      %s23 = sphi 0, %s21
      %s33 = sphi 0, %s35
      %s36 = sphi 0, %s33
      %s37 = sphi 0, %s36
      %s53 = sphi 0, %s37
      %s61 = sphi 0, %s63
      %s64 = sphi 0, %s61
      %s65 = sphi 0, %s64
      %s81 = sphi 0, %s65
      %s89 = sphi 0, %s91
      %s92 = sphi 0, %s89
      %s93 = sphi 0, %s92
      %s109 = sphi 0, %s93
    $region4: #{tpu_custom_call.1} parent=1 // loop_header_branch
      %14 = sbr.rel (%p12) target = $region8
    $region5: #{tpu_custom_call.1} parent=1 // loop_body
      %s16 = ssub.s32 %s11, 1
      %s17 = ssub.s32 %s11, 2
      %s24 = sadd.s32 1, %s19
      %p25 = scmp.ge.s32.totalorder %s24, 1
      %s26 = scalar_select %p25, 0, %s24
      %s27 = sadd.s32 1, %s18
      %s28 = scalar_select %p25, %s27, %s18
      %p29 = scmp.ge.s32.totalorder %s28, 2
      %s30 = scalar_select %p29, 0, %s28
      %s31 = ssub.s32 %s18, %s30
      %p32 = scmp.eq.s32.totalorder %s31, 0
      %s34 = sadd.s32 %s33, 1
      %s35 = scalar_select %p32, %s33, %s34
      %p38 = pneg %p32
      %p39 = scmp.eq.s32.totalorder %s11, 1
      %p40 = por %p38, %p39
      %p41 = scmp.ne.s32.totalorder %s33, %s36
      %p42 = scmp.eq.s32.totalorder %s11, 0
      %p43 = por %p41, %p42
      %p44 = scmp.ne.s32.totalorder %s33, %s36
      %p45 = scmp.eq.s32.totalorder %s16, 1
      %p46 = por %p44, %p45
      %p47 = scmp.ne.s32.totalorder %s36, %s37
      %p48 = scmp.eq.s32.totalorder %s16, 0
      %p49 = por %p47, %p48
      %p50 = scmp.ne.s32.totalorder %s36, %s37
      %p51 = scmp.eq.s32.totalorder %s17, 1
      %p52 = por %p50, %p51
      %p54 = scmp.ne.s32.totalorder %s37, %s53
      %p55 = scmp.eq.s32.totalorder %s17, 0
      %p56 = por %p54, %p55
      %s57 = ssub.s32 %s18, %s30
      %s58 = ssub.s32 %s19, %s26
      %s59 = sor.u32 %s57, %s58
      %p60 = scmp.eq.s32.totalorder %s59, 0
      %s62 = sadd.s32 %s61, 1
      %s63 = scalar_select %p60, %s61, %s62
      %p66 = pneg %p60
      %p67 = scmp.eq.s32.totalorder %s11, 1
      %p68 = por %p66, %p67
      %p69 = scmp.ne.s32.totalorder %s61, %s64
      %p70 = scmp.eq.s32.totalorder %s11, 0
      %p71 = por %p69, %p70
      %p72 = scmp.ne.s32.totalorder %s61, %s64
      %p73 = scmp.eq.s32.totalorder %s16, 1
      %p74 = por %p72, %p73
      %p75 = scmp.ne.s32.totalorder %s64, %s65
      %p76 = scmp.eq.s32.totalorder %s16, 0
      %p77 = por %p75, %p76
      %p78 = scmp.ne.s32.totalorder %s64, %s65
      %p79 = scmp.eq.s32.totalorder %s17, 1
      %p80 = por %p78, %p79
      %p82 = scmp.ne.s32.totalorder %s65, %s81
      %p83 = scmp.eq.s32.totalorder %s17, 0
      %p84 = por %p82, %p83
      %s85 = ssub.s32 %s18, %s30
      %s86 = ssub.s32 %s19, %s26
      %s87 = sor.u32 %s85, %s86
      %p88 = scmp.eq.s32.totalorder %s87, 0
      %s90 = sadd.s32 %s89, 1
      %s91 = scalar_select %p88, %s89, %s90
      %p94 = pneg %p88
      %p95 = scmp.eq.s32.totalorder %s11, 1
      %p96 = por %p94, %p95
      %p97 = scmp.ne.s32.totalorder %s89, %s92
      %p98 = scmp.eq.s32.totalorder %s11, 0
      %p99 = por %p97, %p98
      %p100 = scmp.ne.s32.totalorder %s89, %s92
      %p101 = scmp.eq.s32.totalorder %s16, 1
      %p102 = por %p100, %p101
      %p103 = scmp.ne.s32.totalorder %s92, %s93
      %p104 = scmp.eq.s32.totalorder %s16, 0
      %p105 = por %p103, %p104
      %p106 = scmp.ne.s32.totalorder %s92, %s93
      %p107 = scmp.eq.s32.totalorder %s17, 1
      %p108 = por %p106, %p107
      %p110 = scmp.ne.s32.totalorder %s93, %s109
      %p111 = scmp.eq.s32.totalorder %s17, 0
      %p112 = por %p110, %p111
      %p113 = scmp.le.s32.totalorder 1, %s11
      %p114 = scmp.lt.s32.totalorder %s11, 3
      %p115 = pnand %p113, %p114
      %p116 = pneg %p115
      // Predicated region
      $region9: #{tpu_custom_call.1} parent=5 // pred_check
        _
      $region10: #{tpu_custom_call.1} parent=5 // pred_check_branch
        %118 = sbr.rel (%p115) target = $region12
      $region11: #{tpu_custom_call.1} parent=5 // pred_region
        %s119 = ssub.s32 %s11, 1
      $region12: #{tpu_custom_call.1} parent=5 // pred_fallthru
        _
      %p120 = scmp.lt.s32.totalorder %s11, 2
      // Predicated region
      $region13: #{tpu_custom_call.1} parent=5 // pred_check
        %p121 = pneg %p120
      $region14: #{tpu_custom_call.1} parent=5 // pred_check_branch
        %123 = sbr.rel (%p121) target = $region16
      $region15: #{tpu_custom_call.1} parent=5 // pred_region
        // Predicated region
        $region17: #{tpu_custom_call.1} parent=15 // pred_check
          %p124 = pneg %p43
        $region18: #{tpu_custom_call.1} parent=15 // pred_check_branch
          %126 = sbr.rel (%p124) target = $region20
        $region19: #{tpu_custom_call.1} parent=15 // pred_region
          %s127 = sand.u32 %s33, 1
          %s128 = sand.u32 %s33, 1
          %s129 = smul.addr %s128, 16
          %s130 = scalar_lea.vmem [#allocation2], %s129
          %s131 = smul.addr %s18, 8
          %s132 = scalar_lea.vmem %s0, %s131
          // Predicated region
          $region21: #{tpu_custom_call.1} parent=19 // pred_check
            _
          $region22: #{tpu_custom_call.1} parent=19 // pred_check_branch
            %134 = sbr.rel (0) target = $region24
          $region23: #{tpu_custom_call.1} parent=19 // pred_region
            // Predicated region
            $region25: #{tpu_custom_call.1} parent=23 // pred_check
              _
            $region26: #{tpu_custom_call.1} parent=23 // pred_check_branch
              %136 = sbr.rel (0) target = $region28
            $region27: #{tpu_custom_call.1} parent=23 // pred_region
              // Predicated region
              $region40: #{tpu_custom_call.1} parent=27 // pred_check
                _
              $region41: #{tpu_custom_call.1} parent=27 // pred_check_branch
                %154 = sbr.rel (0) target = $region43
              $region42: #{tpu_custom_call.1} parent=27 // pred_region
                loop: start=0, step=1, limit=1
                $region44: #{tpu_custom_call.1} parent=42 // loop_pre_header
                  _
                $region45: #{tpu_custom_call.1} parent=42 // loop_header
                  %s156 = sphi 0, %s160
                  %p157 = scmp.ge.s32.totalorder %s156, 1
                  %s161 = sphi %s132, %s132
                  %s162 = sphi %s130, %s130
                $region46: #{tpu_custom_call.1} parent=42 // loop_header_branch
                  %159 = sbr.rel (%p157) target = $region50
                $region47: #{tpu_custom_call.1} parent=42 // loop_body
                  %v163 = vld [vmem:[%s161] sm:$0xff]
                  %164 = vst [vmem:[%s162] sm:$0xff] %v163
                  %v165 = vld [vmem:[%s161 + $0x10] sm:$0xff]
                  %166 = vst [vmem:[%s162 + $0x8] sm:$0xff] %v165
                $region48: #{tpu_custom_call.1} parent=42 // loop_footer
                  %s160 = sadd.s32 1, %s156
                $region49: #{tpu_custom_call.1} parent=42 // loop_footer_branch
                  %155 = sbr.rel target = $region45
                $region50: #{tpu_custom_call.1} parent=42 // loop_exit
                  _
              $region43: #{tpu_custom_call.1} parent=27 // pred_fallthru
                _
              // Predicated region
              $region51: #{tpu_custom_call.1} parent=27 // pred_check
                _
              $region52: #{tpu_custom_call.1} parent=27 // pred_check_branch
                %168 = sbr.rel target = $region54
              $region53: #{tpu_custom_call.1} parent=27 // pred_region
                _
              $region54: #{tpu_custom_call.1} parent=27 // pred_fallthru
                _
            $region28: #{tpu_custom_call.1} parent=23 // pred_fallthru
              _
            // Predicated region
            $region29: #{tpu_custom_call.1} parent=23 // pred_check
              _
            $region30: #{tpu_custom_call.1} parent=23 // pred_check_branch
              %138 = sbr.rel target = $region32
            $region31: #{tpu_custom_call.1} parent=23 // pred_region
              %s140 = ssub.s32 256, 1
              loop: start=0, step=1, limit=1
              $region33: #{tpu_custom_call.1} parent=31 // loop_pre_header
                _
              $region34: #{tpu_custom_call.1} parent=31 // loop_header
                %s142 = sphi 0, %s146
                %p143 = scmp.ge.s32.totalorder %s142, 1
                %s147 = sphi %s132, %s132
                %s148 = sphi %s130, %s130
              $region35: #{tpu_custom_call.1} parent=31 // loop_header_branch
                %145 = sbr.rel (%p143) target = $region39
              $region36: #{tpu_custom_call.1} parent=31 // loop_body
                %v149 = vld [vmem:[%s147] sm:%s140]
                %150 = vst [vmem:[%s148] sm:%s140] %v149
                %v151 = vld [vmem:[%s147 + $0x10] sm:%s140]
                %152 = vst [vmem:[%s148 + $0x8] sm:%s140] %v151
              $region37: #{tpu_custom_call.1} parent=31 // loop_footer
                %s146 = sadd.s32 1, %s142
              $region38: #{tpu_custom_call.1} parent=31 // loop_footer_branch
                %141 = sbr.rel target = $region34
              $region39: #{tpu_custom_call.1} parent=31 // loop_exit
                _
            $region32: #{tpu_custom_call.1} parent=23 // pred_fallthru
              _
          $region24: #{tpu_custom_call.1} parent=19 // pred_fallthru
            _
          %169 = vnop
        $region20: #{tpu_custom_call.1} parent=15 // pred_fallthru
          _
        // Predicated region
        $region55: #{tpu_custom_call.1} parent=15 // pred_check
          %p170 = pneg %p71
        $region56: #{tpu_custom_call.1} parent=15 // pred_check_branch
          %172 = sbr.rel (%p170) target = $region58
        $region57: #{tpu_custom_call.1} parent=15 // pred_region
          %s173 = smul.u32 2, %s19
          %p174 = scmp.lt.s32.totalorder %s18, 1
          %s175 = scalar_select %p174, %s18, 1
          %p176 = scmp.lt.s32.totalorder %s173, 1
          %s177 = scalar_select %p176, %s173, 1
          %s178 = smul.addr %s175, 2
          %s179 = sadd.s32 %s177, %s178
          %s180 = smul.addr %s179, 8
          %s181 = scalar_lea.vmem %s1, %s180
          %s182 = smul.u32 2, %s19
        $region58: #{tpu_custom_call.1} parent=15 // pred_fallthru
          _
      $region16: #{tpu_custom_call.1} parent=5 // pred_fallthru
        _
      %p183 = scmp.le.s32.totalorder 1, %s11
      %p184 = scmp.lt.s32.totalorder %s11, 3
      %p185 = pnand %p183, %p184
      %p186 = pneg %p185
      // Predicated region
      $region59: #{tpu_custom_call.1} parent=5 // pred_check
        _
      $region60: #{tpu_custom_call.1} parent=5 // pred_check_branch
        %188 = sbr.rel (%p185) target = $region62
      $region61: #{tpu_custom_call.1} parent=5 // pred_region
        %s189 = ssub.s32 %s11, 1
        %s190 = sand.u32 %s36, 1
        %s191 = sand.u32 %s36, 1
        %s192 = smul.addr %s191, 16
        %s193 = scalar_lea.vmem [#allocation2], %s192
        // Predicated region
        $region63: #{tpu_custom_call.1} parent=61 // pred_check
          %p194 = pneg %p49
        $region64: #{tpu_custom_call.1} parent=61 // pred_check_branch
          %196 = sbr.rel (%p194) target = $region66
        $region65: #{tpu_custom_call.1} parent=61 // pred_region
          _
        $region66: #{tpu_custom_call.1} parent=61 // pred_fallthru
          _
        %s197 = sand.u32 %s36, 1
        %s198 = sand.u32 %s36, 1
        %s199 = smul.addr %s198, 16
        %s200 = scalar_lea.vmem [#allocation2], %s199
        %p201 = pneg %p49
        %p202 = pneg %p46
        %s203 = smul.u32 2, %s21
        %p204 = scmp.lt.s32.totalorder %s20, 1
        %s205 = scalar_select %p204, %s20, 1
        %p206 = scmp.lt.s32.totalorder %s203, 1
        %s207 = scalar_select %p206, %s203, 1
        %s208 = smul.addr %s205, 2
        %s209 = sadd.s32 %s207, %s208
        %s210 = smul.addr %s209, 8
        %s211 = scalar_lea.vmem %s1, %s210
        %p212 = pneg %p77
        %p213 = pneg %p74
        %p214 = pneg %p105
        %p215 = pneg %p102
        %s216 = sand.u32 %s92, 1
        %s217 = scalar_lea.sflag [#allocation4], %s216
        %s218 = sand.u32 %s92, 1
        %s219 = smul.addr %s218, 16
        %s220 = scalar_lea.vmem [#allocation3], %s219
        %s221 = smul.u32 2, %s21
        %p222 = scmp.lt.s32.totalorder %s20, 1
        %s223 = scalar_select %p222, %s20, 1
        %p224 = scmp.lt.s32.totalorder %s221, 1
        %s225 = scalar_select %p224, %s221, 1
        %s226 = smul.addr %s223, 2
        %s227 = sadd.s32 %s225, %s226
        %s228 = smul.addr %s227, 8
        %s229 = scalar_lea.vmem %s1, %s228
        %s230 = smul.u32 2, %s21
        %s231 = smul.u32 2, %s21
        %v232 = vld [vmem:[%s193] sm:$0xff]
        %s233 = scalar_lea.vmem %s193, 8 [#allocation2]
        %v234 = vld [vmem:[%s233] sm:$0xff]
        %v235 = vld [vmem:[%s229] sm:$0xff]
        %v236 = vld [vmem:[%s229 + $0x8] sm:$0xff]
        %238 = vset.pattern.permute.xlu0 0
        %239 = vperm.xlu0 %238, %v232
        %v240 = vpop.permute.xlu0 %239
        %v242 = vmul.f32 %v235, %v240
        %v243 = vmul.f32 %v236, %v240
        %245 = vset.pattern.permute.xlu0 0
        %246 = vperm.xlu0 %245, %v234
        %v247 = vpop.permute.xlu0 %246
        %v249 = vadd.f32 %v242, %v247
        %v250 = vadd.f32 %v243, %v247
        %251 = vst [vmem:[%s220] sm:$0xff] %v249
        %252 = vst [vmem:[%s220 + $0x8] sm:$0xff] %v250
        %s253 = sand.u32 %s92, 1
        %s254 = scalar_lea.sflag [#allocation4], %s253
        %s255 = sand.u32 %s92, 1
        %s256 = smul.addr %s255, 16
        %s257 = scalar_lea.vmem [#allocation3], %s256
        // Predicated region
        $region67: #{tpu_custom_call.1} parent=61 // pred_check
          %p258 = pneg %p102
        $region68: #{tpu_custom_call.1} parent=61 // pred_check_branch
          %260 = sbr.rel (%p258) target = $region70
        $region69: #{tpu_custom_call.1} parent=61 // pred_region
          %s261 = smul.u32 2, %s21
          %263 = vsyncadd %s254, 0
          %s264 = smul.addr %s20, 2
          %s265 = sadd.s32 %s261, %s264
          %s266 = smul.addr %s265, 8
          %s267 = scalar_lea.hbm %s2, %s266
          %s269 = sshll.u32 %s257, 4
          %s270 = int_to_ptr.vmem [resolvable:$true] %s269
          %s271 = sshll.u32 %s267, 4
          %s272 = int_to_ptr.hbm [resolvable:$true] %s271
          %274 = dma.vmem_to_hbm [thread:$0]  %s270, 256, %s272, %s254
        $region70: #{tpu_custom_call.1} parent=61 // pred_fallthru
          _
      $region62: #{tpu_custom_call.1} parent=5 // pred_fallthru
        _
      %p275 = scmp.le.s32.totalorder 2, %s11
      // Predicated region
      $region71: #{tpu_custom_call.1} parent=5 // pred_check
        %p276 = pneg %p275
      $region72: #{tpu_custom_call.1} parent=5 // pred_check_branch
        %278 = sbr.rel (%p276) target = $region74
      $region73: #{tpu_custom_call.1} parent=5 // pred_region
        %s279 = ssub.s32 %s11, 2
        // Predicated region
        $region75: #{tpu_custom_call.1} parent=73 // pred_check
          %p280 = pneg %p108
        $region76: #{tpu_custom_call.1} parent=73 // pred_check_branch
          %282 = sbr.rel (%p280) target = $region78
        $region77: #{tpu_custom_call.1} parent=73 // pred_region
          %s283 = sand.u32 %s93, 1
          %s284 = scalar_lea.sflag [#allocation4], %s283
          %s285 = sand.u32 %s93, 1
          %s286 = smul.addr %s285, 16
          %s287 = scalar_lea.vmem [#allocation3], %s286
          %289 = dma.done %s284, 256
        $region78: #{tpu_custom_call.1} parent=73 // pred_fallthru
          _
      $region74: #{tpu_custom_call.1} parent=5 // pred_fallthru
        _
    $region6: #{tpu_custom_call.1} parent=1 // loop_footer
      %s15 = sadd.s32 1, %s11
    $region7: #{tpu_custom_call.1} parent=1 // loop_footer_branch
      %10 = sbr.rel target = $region3
    $region8: #{tpu_custom_call.1} parent=1 // loop_exit
      _
    %290 = vsyncpa [#allocation4], 1
    %s291 = scalar_lea.sflag [#allocation4], 1
    %292 = vsyncpa %s291, 1

</llo_original>
